<compile_context>
chip_gen: v5e
topology: v5e:2x2
jax: 0.10.0
libtpu: 0.0.40
codegen_flags: <defaults>
</compile_context>

<pallas_src>
import numpy as np
import jax
import jax.numpy as jnp
from jax.experimental import pallas as pl
from jax.experimental.pallas import tpu as pltpu

_STATS_LANES = 128  # lane-dense stats slab; only lanes 0..2 are meaningful


def _make_caption_trim_kernel(null_id: int, end_id: int, sep_id: int):
    """Build the kernel with the special-token ids baked in as constants."""

    def kernel(tok_ref, stats_ref):
        toks = tok_ref[...]                                   # (TB, S) int32
        TB, S = toks.shape
        pos = jax.lax.broadcasted_iota(jnp.int32, (TB, S), 1)  # lane index

        # --- trim trailing <NULL>/<END>: length = last non-special index + 1
        is_special = (toks == null_id) | (toks == end_id)
        keep_cand = jnp.where(is_special, 0, pos + 1)
        length = jnp.max(keep_cand, axis=1, keepdims=True)     # (TB, 1)

        # --- tokens inside the trimmed region (computed once, reused)
        in_trim = pos < length                                 # (TB, S) bool

        # --- locate <sep> tokens inside the trimmed region
        is_sep = (toks == sep_id) & in_trim
        sep_count = jnp.sum(is_sep.astype(jnp.int32), axis=1, keepdims=True)
        sep_pos_cand = jnp.where(is_sep, pos, S)               # S = sentinel
        sep_pos = jnp.min(sep_pos_cand, axis=1, keepdims=True)
        sep_pos = jnp.where(sep_count > 0, sep_pos, -1)

        # --- pack per-row scalars into a narrow 128-lane stats slab
        lane = jax.lax.broadcasted_iota(jnp.int32, (TB, _STATS_LANES), 1)
        stats = jnp.where(
            lane == 0, length,
            jnp.where(lane == 1, sep_count,
                      jnp.where(lane == 2, sep_pos, 0)))
        stats_ref[...] = stats.astype(jnp.int32)

    return kernel


def caption_trim(tokens: jax.Array, null_id: int, end_id: int, sep_id: int,
                 block_b: int | None = None):
    """tokens: int32 [B, S] with B % 8 == 0 and S % 128 == 0.

    Returns:
      stats: int32 [B, 128]; per row lane 0 = trimmed length,
             lane 1 = <sep> count (within trimmed region),
             lane 2 = first <sep> position (or -1). Lanes 3.. are zero pad.
    """
    B, S = tokens.shape
    assert B % 8 == 0 and S % 128 == 0, "pad tokens to (8k, 128m)"

    if block_b is None:
        # Target ~1 MiB of token data per block (safe for v5e/v6e/v7x VMEM
        # with double-buffering), multiple of 8 rows, at most B.
        target = max(8, (1 << 20) // (S * 4))
        block_b = min(B, max(8, (target // 8) * 8))
    # Fall back to a divisor of B (B is a multiple of 8, so 8 always works).
    while B % block_b != 0:
        block_b -= 8
    assert block_b >= 8 and B % block_b == 0 and block_b % 8 == 0

    kernel = _make_caption_trim_kernel(null_id, end_id, sep_id)
    grid = (B // block_b,)
    return pl.pallas_call(
        kernel,
        out_shape=jax.ShapeDtypeStruct((B, _STATS_LANES), jnp.int32),
        grid=grid,
        in_specs=[pl.BlockSpec((block_b, S), lambda i: (i, 0))],
        out_specs=pl.BlockSpec((block_b, _STATS_LANES), lambda i: (i, 0)),
        compiler_params=pltpu.CompilerParams(
            dimension_semantics=("parallel",)),
    )(tokens)


# ----------------------------------------------------------------------------
# Host-side glue reproducing CaptionMetrics.forward semantics (string side).
# TODO(synk): BLEU/CIDEr/METEOR scoring, Logger hooks and the file writes in
#             start_epoch/end_epoch are host-only and have no Pallas analog.
# ----------------------------------------------------------------------------
def forward_with_kernel(tokens_padded, vocab, null_id, end_id, sep_id,
                        n_real, seq_len):
    stats_dev = caption_trim(tokens_padded, null_id, end_id, sep_id)
    # Only transfer the 3 meaningful lanes of the real rows to the host.
    stats = np.asarray(
        jax.block_until_ready(stats_dev[:n_real, :3])).copy()
    toks = np.asarray(tokens_padded)

    sentences = {'ground_truth': {'action': [], 'justification': []},
                 'predicted': {'action': [], 'justification': []}}
    for b in range(n_real):
        length = int(stats[b, 0])
        sep_count = int(stats[b, 1])
        sep_pos = int(stats[b, 2])
        if sep_count != 1:          # len(split) != 2 -> continue
            continue
        words = [vocab[int(t)] for t in toks[b, :length]]
        action = ' '.join(words[:sep_pos])
        justification = ' '.join(words[sep_pos + 1:length])
        sentences['predicted']['action'].append(action)
        sentences['predicted']['justification'].append(justification)
        # (ground-truth strings would come from batch['caption_text'] here)
        sentences['ground_truth']['action'].append(action)
        sentences['ground_truth']['justification'].append(justification)
    return sentences, stats


def _reference_trim(tok_row, vocab):
    """Pure-Python reference mirroring the PyTorch forward loop."""
    words = [vocab[int(t)] for t in tok_row]
    k = len(words) - 1
    while k >= 0 and words[k] in ['<NULL>', '<END>']:
        k -= 1
    length = k + 1
    trimmed = words[:length]
    sep_positions = [i for i, w in enumerate(trimmed) if w == '<sep>']
    sep_count = len(sep_positions)
    sep_pos = sep_positions[0] if sep_positions else -1
    return length, sep_count, sep_pos


if __name__ == "__main__":
    vocab = ['<NULL>', '<START>', '<END>', '<sep>',
             'the', 'car', 'stops', 'because', 'light', 'is', 'red',
             'turns', 'left', 'road', 'clear', 'slows']
    NULL_ID = vocab.index('<NULL>')
    END_ID = vocab.index('<END>')
    SEP_ID = vocab.index('<sep>')

    # Deterministic synthetic "sentence_decoded" token ids: batch=2, seq=16.
    B, S = 2, 16
    key = jax.random.PRNGKey(0)
    word_ids = np.array([i for i in range(len(vocab))
                         if i not in (NULL_ID, END_ID, SEP_ID)], np.int32)
    # np.asarray on a jax array can be read-only -> make an explicit copy.
    toks = np.asarray(
        jax.random.choice(key, jnp.asarray(word_ids), shape=(B, S))
    ).astype(np.int32).copy()
    # Inject structure: "<action words> <sep> <justif words> <END> <NULL>..."
    for b in range(B):
        toks[b, 5] = SEP_ID
        toks[b, 12] = END_ID
        toks[b, 13:] = NULL_ID

    # Pad to TPU tile (8, 128); padding rows/cols are <NULL> (trailing-trimmed).
    B_PAD, S_PAD = 8, 128
    padded = np.full((B_PAD, S_PAD), NULL_ID, dtype=np.int32)
    padded[:B, :S] = toks
    padded_j = jnp.asarray(padded)

    sentences, stats = forward_with_kernel(
        padded_j, vocab, NULL_ID, END_ID, SEP_ID, n_real=B, seq_len=S)

    # Verify kernel output against the pure-Python reference of forward().
    ok = True
    for b in range(B):
        ref_len, ref_cnt, ref_pos = _reference_trim(padded[b, :S], vocab)
        ok &= (int(stats[b, 0]) == ref_len)
        ok &= (int(stats[b, 1]) == ref_cnt)
        ok &= (int(stats[b, 2]) == ref_pos)
    assert ok, "Pallas kernel disagrees with reference forward semantics"
    assert len(sentences['predicted']['action']) == B

    print("KERNEL_OK")
</pallas_src>

<mosaic_0001>
module attributes {stable_mosaic.version = 11 : i64} {
  func.func @kernel(%arg0: i32, %arg1: memref<8x128xi32, #tpu.memory_space<vmem>>, %arg2: memref<8x128xi32, #tpu.memory_space<vmem>>) attributes {dimension_semantics = [#tpu.dimension_semantics<parallel>], iteration_bounds = array<i64: 1>, scalar_prefetch = 0 : i64, scratch_operands = 0 : i64, tpu.core_type = #tpu.core_type<tc>, window_params = [{transform_indices = @transform_0, window_bounds = array<i64: 8, 128>}, {transform_indices = @transform_1, window_bounds = array<i64: 8, 128>}]} {
    %c0 = arith.constant 0 : index
    %c0_0 = arith.constant 0 : index
    %0 = vector.load %arg1[%c0, %c0_0] : memref<8x128xi32, #tpu.memory_space<vmem>>, vector<8x128xi32>
    %1 = tpu.iota {dimensions = array<i32: 1>} : vector<8x128xi32>
    %c0_i32 = arith.constant 0 : i32
    %2 = vector.broadcast %c0_i32 : i32 to vector<8x128xi32>
    %3 = arith.cmpi eq, %0, %2 : vector<8x128xi32>
    %c2_i32 = arith.constant 2 : i32
    %4 = vector.broadcast %c2_i32 : i32 to vector<8x128xi32>
    %5 = arith.cmpi eq, %0, %4 : vector<8x128xi32>
    %6 = arith.ori %3, %5 : vector<8x128xi1>
    %c1_i32 = arith.constant 1 : i32
    %7 = vector.broadcast %c1_i32 : i32 to vector<8x128xi32>
    %8 = arith.addi %1, %7 : vector<8x128xi32>
    %c0_i32_1 = arith.constant 0 : i32
    %9 = vector.broadcast %c0_i32_1 : i32 to vector<8x128xi32>
    %10 = arith.select %6, %9, %8 : vector<8x128xi1>, vector<8x128xi32>
    %cst = arith.constant dense<-2147483648> : vector<8xi32>
    %11 = vector.multi_reduction <maxsi>, %10, %cst [1] : vector<8x128xi32> to vector<8xi32>
    %12 = vector.shape_cast %11 : vector<8xi32> to vector<8x1xi32>
    %13 = vector.broadcast %12 : vector<8x1xi32> to vector<8x128xi32>
    %14 = arith.cmpi slt, %1, %13 : vector<8x128xi32>
    %c3_i32 = arith.constant 3 : i32
    %15 = vector.broadcast %c3_i32 : i32 to vector<8x128xi32>
    %16 = arith.cmpi eq, %0, %15 : vector<8x128xi32>
    %17 = arith.andi %16, %14 : vector<8x128xi1>
    %18 = arith.extui %17 : vector<8x128xi1> to vector<8x128xi32>
    %cst_2 = arith.constant dense<0> : vector<8xi32>
    %19 = vector.multi_reduction <add>, %18, %cst_2 [1] : vector<8x128xi32> to vector<8xi32>
    %20 = vector.shape_cast %19 : vector<8xi32> to vector<8x1xi32>
    %c128_i32 = arith.constant 128 : i32
    %21 = vector.broadcast %c128_i32 : i32 to vector<8x128xi32>
    %22 = arith.select %17, %1, %21 : vector<8x128xi1>, vector<8x128xi32>
    %cst_3 = arith.constant dense<2147483647> : vector<8xi32>
    %23 = vector.multi_reduction <minsi>, %22, %cst_3 [1] : vector<8x128xi32> to vector<8xi32>
    %24 = vector.shape_cast %23 : vector<8xi32> to vector<8x1xi32>
    %c0_i32_4 = arith.constant 0 : i32
    %25 = vector.broadcast %c0_i32_4 : i32 to vector<8x1xi32>
    %26 = arith.cmpi sgt, %20, %25 : vector<8x1xi32>
    %c-1_i32 = arith.constant -1 : i32
    %27 = vector.broadcast %c-1_i32 : i32 to vector<8x1xi32>
    %28 = arith.select %26, %24, %27 : vector<8x1xi1>, vector<8x1xi32>
    %29 = tpu.iota {dimensions = array<i32: 1>} : vector<8x128xi32>
    %c0_i32_5 = arith.constant 0 : i32
    %30 = vector.broadcast %c0_i32_5 : i32 to vector<8x128xi32>
    %31 = arith.cmpi eq, %29, %30 : vector<8x128xi32>
    %c1_i32_6 = arith.constant 1 : i32
    %32 = vector.broadcast %c1_i32_6 : i32 to vector<8x128xi32>
    %33 = arith.cmpi eq, %29, %32 : vector<8x128xi32>
    %c2_i32_7 = arith.constant 2 : i32
    %34 = vector.broadcast %c2_i32_7 : i32 to vector<8x128xi32>
    %35 = arith.cmpi eq, %29, %34 : vector<8x128xi32>
    %c0_i32_8 = arith.constant 0 : i32
    %36 = vector.shape_cast %28 : vector<8x1xi32> to vector<8x1xi32>
    %37 = vector.broadcast %36 : vector<8x1xi32> to vector<8x128xi32>
    %38 = vector.broadcast %c0_i32_8 : i32 to vector<8x128xi32>
    %39 = arith.select %35, %37, %38 : vector<8x128xi1>, vector<8x128xi32>
    %40 = vector.shape_cast %20 : vector<8x1xi32> to vector<8x1xi32>
    %41 = vector.broadcast %40 : vector<8x1xi32> to vector<8x128xi32>
    %42 = arith.select %33, %41, %39 : vector<8x128xi1>, vector<8x128xi32>
    %43 = vector.shape_cast %12 : vector<8x1xi32> to vector<8x1xi32>
    %44 = vector.broadcast %43 : vector<8x1xi32> to vector<8x128xi32>
    %45 = arith.select %31, %44, %42 : vector<8x128xi1>, vector<8x128xi32>
    %c0_9 = arith.constant 0 : index
    %c0_10 = arith.constant 0 : index
    %46 = vector.load %arg2[%c0_9, %c0_10] : memref<8x128xi32, #tpu.memory_space<vmem>>, vector<8x128xi32>
    tpu.vector_store %arg2[%c0_9, %c0_10], %45 {strides = array<i32>} : memref<8x128xi32, #tpu.memory_space<vmem>>, vector<8x128xi32>,
    return
  }
  func.func @transform_0(%arg0: i32) -> (i32, i32) {
    %c0_i32 = arith.constant 0 : i32
    %c0_i32_0 = arith.constant 0 : i32
    return %arg0, %c0_i32 : i32, i32
  }
  func.func @transform_1(%arg0: i32) -> (i32, i32) {
    %c0_i32 = arith.constant 0 : i32
    %c0_i32_0 = arith.constant 0 : i32
    return %arg0, %c0_i32 : i32, i32
  }
}

</mosaic_0001>

<llo_original>
// kernel: tpu_custom_call.1
$region0: #{tpu_custom_call.1}
  #allocation0 [shape = 'u32[]', space=smem, size = 0x4, offset = 0x4, fixed_abs, tag = 'smem constant byte address 0x4 - core index']
  #allocation1 [shape = 'u32[72,128]{1,0:T(1,128)}', space=vmem, size = 0x9000, scoped, tag = 'internal scratch']
  %s0 = inlined_call_operand.hbm [shape: s32[8,128], index: 0, kind: input, shape index: {}]
  %s1 = inlined_call_operand.hbm [shape: s32[8,128], index: 1, kind: output, shape index: {}]
  %s2 = sld [smem:[#allocation0]]
  $region18: #{tpu_custom_call.1} parent=0
    _
  %s4 = ssub.s32 1, %s2
  %s5 = scalar_select 0, %s4, %s2
  $region1: #{tpu_custom_call.1} parent=0
    #allocation2 [shape = 'u8[4096]{0}', space=vmem, size = 0x1000, scoped, tag = 'input window, operand 0, single buffered']
    #allocation3 [shape = 's32[1]{0}', space=sflag, size = 0x4, scoped, tag = 'scoped memory for tpu_custom_call.1']
    #allocation4 [shape = 's32[1]{0}', space=sflag, size = 0x4, scoped, tag = 'scoped memory for tpu_custom_call.1']
    #allocation5 [shape = 'u8[4096]{0}', space=vmem, size = 0x1000, scoped, tag = 'output window, operand 0, single buffered']
    %6 = vsyncpa [#allocation3], 0
    %7 = vsyncpa [#allocation4], 0
    // Predicated region
    $region2: #{tpu_custom_call.1} parent=1 // pred_check
      _
    $region3: #{tpu_custom_call.1} parent=1 // pred_check_branch
      %9 = sbr.rel (0) target = $region5
    $region4: #{tpu_custom_call.1} parent=1 // pred_region
      %11 = vsyncadd [#allocation3], 0
      %s13 = sshll.u32 %s0, 4
      %s14 = int_to_ptr.hbm [resolvable:$true] %s13
      %s15 = sshll.u32 [#allocation2], 4
      %s16 = int_to_ptr.vmem [resolvable:$true] %s15
      %18 = dma.hbm_to_vmem [thread:$0]  %s14, 128, %s16, [#allocation3]
    $region5: #{tpu_custom_call.1} parent=1 // pred_fallthru
      _
    // Predicated region
    $region6: #{tpu_custom_call.1} parent=1 // pred_check
      _
    $region7: #{tpu_custom_call.1} parent=1 // pred_check_branch
      %20 = sbr.rel (0) target = $region9
    $region8: #{tpu_custom_call.1} parent=1 // pred_region
      %22 = dma.done [#allocation3], 128
    $region9: #{tpu_custom_call.1} parent=1 // pred_fallthru
      _
    %v23 = vld [vmem:[#allocation2] sm:$0xff]
    %v24 = vlaneseq
    %v25 = vand.u32 %v24, 127
    %vm26 = vcmp.eq.s32.totalorder %v23, 0
    %vm27 = vcmp.eq.s32.totalorder %v23, 2
    %vm28 = vmor %vm26, %vm27
    %v29 = vadd.s32 %v25, 1
    %v30 = vsel %vm28, 0, %v29
    %v31 = vand.u32 %v30, 65535
    %v32 = vshra.s32 %v30, 16
    %v33 = vcvt.s32.f32 %v31
    %v34 = vcvt.s32.f32 %v32
    %35 = vmax.xlane.f32.xlu0 %v34
    %v36 = vpop.xlane.xlu0 %35
    %vm37 = vcmp.eq.f32.partialorder %v34, %v36
    %v38 = vsel %vm37, %v33, -inf
    %39 = vmax.xlane.f32.xlu0 %v38
    %v40 = vpop.xlane.xlu0 %39
    %v41 = vcvt.f32.s32 %v40
    %v42 = vcvt.f32.s32 %v36
    %v43 = vshll.u32 %v42, 16
    %v44 = vadd.s32 %v43, %v41
    %vm45 = vcmp.lt.s32.totalorder %v25, %v44
    %vm46 = vcmp.eq.s32.totalorder %v23, 3
    %vm47 = vmand %vm46, %vm45
    %v48 = vsel %vm47, 1, 0
    %v49 = vand.u32 %v48, 65535
    %v50 = vshrl.u32 %v48, 16
    %v51 = vcvt.s32.f32 %v49
    %v52 = vcvt.s32.f32 %v50
    %53 = vadd.xlane.f32.xlu0 %v51
    %v54 = vpop.xlane.xlu0 %53
    %55 = vadd.xlane.f32.xlu0 %v52
    %v56 = vpop.xlane.xlu0 %55
    %v57 = vcvt.f32.s32 %v54
    %v58 = vcvt.f32.s32 %v56
    %v59 = vshll.u32 %v58, 16
    %v60 = vadd.s32 %v59, %v57
    %v61 = vsel %vm47, %v25, 128
    %v62 = vand.u32 %v61, 65535
    %v63 = vshra.s32 %v61, 16
    %v64 = vcvt.s32.f32 %v62
    %v65 = vcvt.s32.f32 %v63
    %66 = vmin.xlane.f32.xlu0 %v65
    %v67 = vpop.xlane.xlu0 %66
    %vm68 = vcmp.eq.f32.partialorder %v65, %v67
    %v69 = vsel %vm68, %v64, inf
    %70 = vmin.xlane.f32.xlu0 %v69
    %v71 = vpop.xlane.xlu0 %70
    %v72 = vcvt.f32.s32 %v71
    %v73 = vcvt.f32.s32 %v67
    %v74 = vshll.u32 %v73, 16
    %v75 = vadd.s32 %v74, %v72
    %vm76 = vcmp.gt.s32.totalorder %v60, 0
    %v77 = vsel %vm76, %v75, 4294967295
    %vm78 = vcmp.eq.s32.totalorder %v25, 0
    %vm79 = vcmp.eq.s32.totalorder %v25, 1
    %vm80 = vcmp.eq.s32.totalorder %v25, 2
    %v81 = vsel %vm80, %v77, 0
    %v82 = vsel %vm79, %v60, %v81
    %v83 = vsel %vm78, %v44, %v82
    %84 = vst [vmem:[#allocation5] sm:$0xff] %v83
    // Predicated region
    $region10: #{tpu_custom_call.1} parent=1 // pred_check
      _
    $region11: #{tpu_custom_call.1} parent=1 // pred_check_branch
      %86 = sbr.rel (0) target = $region13
    $region12: #{tpu_custom_call.1} parent=1 // pred_region
      %88 = vsyncadd [#allocation4], 0
      %s90 = sshll.u32 [#allocation5], 4
      %s91 = int_to_ptr.vmem [resolvable:$true] %s90
      %s92 = sshll.u32 %s1, 4
      %s93 = int_to_ptr.hbm [resolvable:$true] %s92
      %95 = dma.vmem_to_hbm [thread:$0]  %s91, 128, %s93, [#allocation4]
    $region13: #{tpu_custom_call.1} parent=1 // pred_fallthru
      _
    // Predicated region
    $region14: #{tpu_custom_call.1} parent=1 // pred_check
      _
    $region15: #{tpu_custom_call.1} parent=1 // pred_check_branch
      %97 = sbr.rel (0) target = $region17
    $region16: #{tpu_custom_call.1} parent=1 // pred_region
      %99 = dma.done [#allocation4], 128
    $region17: #{tpu_custom_call.1} parent=1 // pred_fallthru
      _
    %100 = vsyncpa [#allocation3], 1
    %101 = vsyncpa [#allocation4], 1

</llo_original>
